<compile_context>
chip_gen: v7x
topology: tpu7x:2x2x1
jax: 0.10.0
libtpu: 0.0.40
codegen_flags: <defaults>
</compile_context>

<pallas_src>
import jax
import jax.numpy as jnp
from jax.experimental import pallas as pl
from jax.experimental.pallas import tpu as pltpu

HIDDEN = 512
LANE = 128
SUBLANE = 8


def _round_up(x, m):
    return ((x + m - 1) // m) * m


def _pick_tm(B):
    """Batch tile size: balanced tiles, >=2 tiles when B > 16, ~512-row tiles at large B."""
    if B <= 16:
        return _round_up(max(B, SUBLANE), SUBLANE)
    n_tiles = max(2, -(-B // 512))
    return _round_up(-(-B // n_tiles), 16)


def _qnet_kernel(x_ref, w1_ref, b1_ref, w2_ref, b2_ref, wh_ref, bh_ref, out_ref):
    # x arrives in f32; cast to bf16 in-kernel (fused with the pipeline, no extra HBM pass).
    x = x_ref[...].astype(jnp.bfloat16)
    # dense1: bf16 operands, f32 MXU accumulation; bias + relu in f32.
    h1 = jnp.dot(x, w1_ref[...], preferred_element_type=jnp.float32)
    h1 = jnp.maximum(h1 + b1_ref[...], 0.0)
    # dense2
    h2 = jnp.dot(h1.astype(jnp.bfloat16), w2_ref[...], preferred_element_type=jnp.float32)
    h2 = jnp.maximum(h2 + b2_ref[...], 0.0)
    # fused heads: single (TM, 128) lane-dense output block, one unmasked store (bf16).
    q = (
        jnp.dot(h2.astype(jnp.bfloat16), wh_ref[...], preferred_element_type=jnp.float32)
        + bh_ref[...]
    )
    out_ref[...] = q.astype(out_ref.dtype)


def pack_params(params):
    """One-time (offline) packing: bf16 weights, heads fused & lane-padded to 128."""
    w1, b1, w2, b2, wr, br, wc, bc, wh, bh = params

    w1p = w1.astype(jnp.bfloat16)
    w2p = w2.astype(jnp.bfloat16)

    w_heads = jnp.concatenate([wr, wc, wh], axis=1)
    b_heads = jnp.concatenate([br, bc, bh], axis=1)
    n_out = w_heads.shape[1]
    out_pad = _round_up(n_out, LANE)
    whp = (
        jnp.zeros((HIDDEN, out_pad), jnp.float32).at[:, :n_out].set(w_heads).astype(jnp.bfloat16)
    )
    bhp = jnp.zeros((1, out_pad), jnp.float32).at[:, :n_out].set(b_heads)

    head_dims = (wr.shape[1], wc.shape[1], wh.shape[1])
    # biases stay f32 (tiny; keeps the VPU epilogue in f32 — v5e has no bf16 VALUs).
    return (w1p, b1, w2p, b2, whp, bhp), out_pad, head_dims


def qnetwork_forward(state, packed):
    """state: (B, H, W) float32.  Returns (row_q, col_q, choice_q) in float32."""
    (w1p, b1, w2p, b2, whp, bhp), out_pad, head_dims = packed
    B, H, W = state.shape
    D = H * W
    x = state.reshape(B, D)  # same semantics as torch .view(-1, H*W); no pad, no cast here

    TM = _pick_tm(B)
    grid = (pl.cdiv(B, TM),)

    def resident(i):  # same block every grid step -> DMA'd once, stays in VMEM
        return (0, 0)

    out = pl.pallas_call(
        _qnet_kernel,
        out_shape=jax.ShapeDtypeStruct((B, out_pad), jnp.bfloat16),
        grid_spec=pltpu.PrefetchScalarGridSpec(
            num_scalar_prefetch=0,
            grid=grid,
            in_specs=[
                pl.BlockSpec((TM, D), lambda i: (i, 0)),       # x tile (f32), K = full D
                pl.BlockSpec((D, HIDDEN), resident),           # w1 (bf16)
                pl.BlockSpec((1, HIDDEN), resident),           # b1 (f32)
                pl.BlockSpec((HIDDEN, HIDDEN), resident),      # w2 (bf16)
                pl.BlockSpec((1, HIDDEN), resident),           # b2 (f32)
                pl.BlockSpec((HIDDEN, out_pad), resident),     # fused head weights (bf16)
                pl.BlockSpec((1, out_pad), resident),          # fused head biases (f32)
            ],
            out_specs=pl.BlockSpec((TM, out_pad), lambda i: (i, 0)),
        ),
        compiler_params=pltpu.CompilerParams(
            dimension_semantics=("parallel",),  # v7x: shard batch tiles across both TCs
        ),
    )(x, w1p, b1, w2p, b2, whp, bhp)

    n_row, n_col, n_cho = head_dims
    out_f32 = out.astype(jnp.float32)  # padded lanes (>=40) are dropped by the slices below
    row_q = out_f32[:, :n_row]
    col_q = out_f32[:, n_row:n_row + n_col]
    cho_q = out_f32[:, n_row + n_col:n_row + n_col + n_cho]
    return row_q, col_q, cho_q


def init_params(key, state_space_size, n_row, n_col, n_choice):
    """Deterministic synthetic parameters (weights stored as (in, out))."""
    def linear(k, fan_in, fan_out):
        k_w, k_b = jax.random.split(k)
        bound = 1.0 / jnp.sqrt(fan_in)
        w = jax.random.uniform(k_w, (fan_in, fan_out), jnp.float32, -bound, bound)
        b = jax.random.uniform(k_b, (1, fan_out), jnp.float32, -bound, bound)
        return w, b

    keys = jax.random.split(key, 5)
    w1, b1 = linear(keys[0], state_space_size, HIDDEN)
    w2, b2 = linear(keys[1], HIDDEN, HIDDEN)
    wr, br = linear(keys[2], HIDDEN, n_row)
    wc, bc = linear(keys[3], HIDDEN, n_col)
    wh, bh = linear(keys[4], HIDDEN, n_choice)
    return (w1, b1, w2, b2, wr, br, wc, bc, wh, bh)


def reference_forward(state, params):
    """Pure-JAX reference mirroring the kernel's bf16 operand / f32 accumulation numerics."""
    B, H, W = state.shape
    x = state.reshape(B, H * W)
    w1, b1, w2, b2, wr, br, wc, bc, wh, bh = params

    def q(a):  # bf16 operand quantization, as seen by the MXU
        return a.astype(jnp.bfloat16).astype(jnp.float32)

    h1 = jnp.maximum(jnp.dot(q(x), q(w1), preferred_element_type=jnp.float32) + b1, 0.0)
    h2 = jnp.maximum(jnp.dot(q(h1), q(w2), preferred_element_type=jnp.float32) + b2, 0.0)
    return (
        jnp.dot(q(h2), q(wr), preferred_element_type=jnp.float32) + br,
        jnp.dot(q(h2), q(wc), preferred_element_type=jnp.float32) + bc,
        jnp.dot(q(h2), q(wh), preferred_element_type=jnp.float32) + bh,
    )


if __name__ == "__main__":
    key = jax.random.PRNGKey(0)
    k_state, k_params = jax.random.split(key)

    # Small shapes: state (B=2, H=8, W=8) -> state_space_size = 64
    B, H, W = 2, 8, 8
    n_row, n_col, n_choice = 16, 16, 8

    state = jax.random.normal(k_state, (B, H, W), dtype=jnp.float32)
    params = init_params(k_params, H * W, n_row, n_col, n_choice)
    packed = pack_params(params)

    outs = qnetwork_forward(state, packed)
    outs = jax.block_until_ready(outs)

    refs = reference_forward(state, params)
    for o, r in zip(outs, refs):
        assert o.shape == r.shape and o.dtype == jnp.float32
        assert jnp.allclose(o, r, atol=2e-2, rtol=2e-2), float(jnp.max(jnp.abs(o - r)))

    print("KERNEL_OK")
</pallas_src>

<mosaic_0001>
module attributes {stable_mosaic.version = 11 : i64} {
  func.func @_qnet_kernel(%arg0: i32, %arg1: memref<8x64xf32, #tpu.memory_space<vmem>>, %arg2: memref<64x512xbf16, #tpu.memory_space<vmem>>, %arg3: memref<1x512xf32, #tpu.memory_space<vmem>>, %arg4: memref<512x512xbf16, #tpu.memory_space<vmem>>, %arg5: memref<1x512xf32, #tpu.memory_space<vmem>>, %arg6: memref<512x128xbf16, #tpu.memory_space<vmem>>, %arg7: memref<1x128xf32, #tpu.memory_space<vmem>>, %arg8: memref<8x128xbf16, #tpu.memory_space<vmem>>) attributes {dimension_semantics = [#tpu.dimension_semantics<parallel>], iteration_bounds = array<i64: 1>, scalar_prefetch = 0 : i64, scratch_operands = 0 : i64, tpu.core_type = #tpu.core_type<tc>, window_params = [{transform_indices = @transform_0, window_bounds = array<i64: 8, 64>}, {pipeline_mode = #tpu.pipeline_mode<synchronous>, transform_indices = @transform_1, window_bounds = array<i64: 64, 512>}, {pipeline_mode = #tpu.pipeline_mode<synchronous>, transform_indices = @transform_2, window_bounds = array<i64: 1, 512>}, {pipeline_mode = #tpu.pipeline_mode<synchronous>, transform_indices = @transform_3, window_bounds = array<i64: 512, 512>}, {pipeline_mode = #tpu.pipeline_mode<synchronous>, transform_indices = @transform_4, window_bounds = array<i64: 1, 512>}, {pipeline_mode = #tpu.pipeline_mode<synchronous>, transform_indices = @transform_5, window_bounds = array<i64: 512, 128>}, {pipeline_mode = #tpu.pipeline_mode<synchronous>, transform_indices = @transform_6, window_bounds = array<i64: 1, 128>}, {transform_indices = @transform_7, window_bounds = array<i64: 8, 128>}]} {
    %c0 = arith.constant 0 : index
    %c0_0 = arith.constant 0 : index
    %0 = vector.load %arg1[%c0, %c0_0] : memref<8x64xf32, #tpu.memory_space<vmem>>, vector<8x64xf32>
    %1 = arith.truncf %0 : vector<8x64xf32> to vector<8x64xbf16>
    %c0_1 = arith.constant 0 : index
    %c0_2 = arith.constant 0 : index
    %2 = vector.load %arg2[%c0_1, %c0_2] : memref<64x512xbf16, #tpu.memory_space<vmem>>, vector<64x512xbf16>
    %cst = arith.constant dense<0.000000e+00> : vector<8x512xf32>
    %3 = tpu.matmul %1, %2, %cst {dimension_numbers = #tpu.dot_dimension_numbers<[1], [0], [0], [1], [0, 0, 1, 1], [], []>} : vector<8x64xbf16>, vector<64x512xbf16>, vector<8x512xf32> -> vector<8x512xf32>
    %c0_3 = arith.constant 0 : index
    %c0_4 = arith.constant 0 : index
    %4 = vector.load %arg3[%c0_3, %c0_4] : memref<1x512xf32, #tpu.memory_space<vmem>>, vector<1x512xf32>
    %5 = vector.broadcast %4 : vector<1x512xf32> to vector<8x512xf32>
    %6 = arith.addf %3, %5 : vector<8x512xf32>
    %cst_5 = arith.constant 0.000000e+00 : f32
    %7 = vector.broadcast %cst_5 : f32 to vector<8x512xf32>
    %8 = arith.maximumf %6, %7 : vector<8x512xf32>
    %9 = arith.truncf %8 : vector<8x512xf32> to vector<8x512xbf16>
    %c0_6 = arith.constant 0 : index
    %c0_7 = arith.constant 0 : index
    %10 = vector.load %arg4[%c0_6, %c0_7] : memref<512x512xbf16, #tpu.memory_space<vmem>>, vector<512x512xbf16>
    %cst_8 = arith.constant dense<0.000000e+00> : vector<8x512xf32>
    %11 = tpu.matmul %9, %10, %cst_8 {dimension_numbers = #tpu.dot_dimension_numbers<[1], [0], [0], [1], [0, 0, 1, 1], [], []>} : vector<8x512xbf16>, vector<512x512xbf16>, vector<8x512xf32> -> vector<8x512xf32>
    %c0_9 = arith.constant 0 : index
    %c0_10 = arith.constant 0 : index
    %12 = vector.load %arg5[%c0_9, %c0_10] : memref<1x512xf32, #tpu.memory_space<vmem>>, vector<1x512xf32>
    %13 = vector.broadcast %12 : vector<1x512xf32> to vector<8x512xf32>
    %14 = arith.addf %11, %13 : vector<8x512xf32>
    %cst_11 = arith.constant 0.000000e+00 : f32
    %15 = vector.broadcast %cst_11 : f32 to vector<8x512xf32>
    %16 = arith.maximumf %14, %15 : vector<8x512xf32>
    %17 = arith.truncf %16 : vector<8x512xf32> to vector<8x512xbf16>
    %c0_12 = arith.constant 0 : index
    %c0_13 = arith.constant 0 : index
    %18 = vector.load %arg6[%c0_12, %c0_13] : memref<512x128xbf16, #tpu.memory_space<vmem>>, vector<512x128xbf16>
    %cst_14 = arith.constant dense<0.000000e+00> : vector<8x128xf32>
    %19 = tpu.matmul %17, %18, %cst_14 {dimension_numbers = #tpu.dot_dimension_numbers<[1], [0], [0], [1], [0, 0, 1, 1], [], []>} : vector<8x512xbf16>, vector<512x128xbf16>, vector<8x128xf32> -> vector<8x128xf32>
    %c0_15 = arith.constant 0 : index
    %c0_16 = arith.constant 0 : index
    %20 = vector.load %arg7[%c0_15, %c0_16] : memref<1x128xf32, #tpu.memory_space<vmem>>, vector<1x128xf32>
    %21 = vector.broadcast %20 : vector<1x128xf32> to vector<8x128xf32>
    %22 = arith.addf %19, %21 : vector<8x128xf32>
    %23 = arith.truncf %22 : vector<8x128xf32> to vector<8x128xbf16>
    %c0_17 = arith.constant 0 : index
    %c0_18 = arith.constant 0 : index
    %24 = vector.load %arg8[%c0_17, %c0_18] : memref<8x128xbf16, #tpu.memory_space<vmem>>, vector<8x128xbf16>
    tpu.vector_store %arg8[%c0_17, %c0_18], %23 {strides = array<i32>} : memref<8x128xbf16, #tpu.memory_space<vmem>>, vector<8x128xbf16>,
    return
  }
  func.func @transform_0(%arg0: i32) -> (i32, i32) {
    %c0_i32 = arith.constant 0 : i32
    %c0_i32_0 = arith.constant 0 : i32
    return %arg0, %c0_i32 : i32, i32
  }
  func.func @transform_1(%arg0: i32) -> (i32, i32) {
    %c0_i32 = arith.constant 0 : i32
    %c0_i32_0 = arith.constant 0 : i32
    %c0_i32_1 = arith.constant 0 : i32
    return %c0_i32, %c0_i32_0 : i32, i32
  }
  func.func @transform_2(%arg0: i32) -> (i32, i32) {
    %c0_i32 = arith.constant 0 : i32
    %c0_i32_0 = arith.constant 0 : i32
    %c0_i32_1 = arith.constant 0 : i32
    return %c0_i32, %c0_i32_0 : i32, i32
  }
  func.func @transform_3(%arg0: i32) -> (i32, i32) {
    %c0_i32 = arith.constant 0 : i32
    %c0_i32_0 = arith.constant 0 : i32
    %c0_i32_1 = arith.constant 0 : i32
    return %c0_i32, %c0_i32_0 : i32, i32
  }
  func.func @transform_4(%arg0: i32) -> (i32, i32) {
    %c0_i32 = arith.constant 0 : i32
    %c0_i32_0 = arith.constant 0 : i32
    %c0_i32_1 = arith.constant 0 : i32
    return %c0_i32, %c0_i32_0 : i32, i32
  }
  func.func @transform_5(%arg0: i32) -> (i32, i32) {
    %c0_i32 = arith.constant 0 : i32
    %c0_i32_0 = arith.constant 0 : i32
    %c0_i32_1 = arith.constant 0 : i32
    return %c0_i32, %c0_i32_0 : i32, i32
  }
  func.func @transform_6(%arg0: i32) -> (i32, i32) {
    %c0_i32 = arith.constant 0 : i32
    %c0_i32_0 = arith.constant 0 : i32
    %c0_i32_1 = arith.constant 0 : i32
    return %c0_i32, %c0_i32_0 : i32, i32
  }
  func.func @transform_7(%arg0: i32) -> (i32, i32) {
    %c0_i32 = arith.constant 0 : i32
    %c0_i32_0 = arith.constant 0 : i32
    return %arg0, %c0_i32 : i32, i32
  }
}

</mosaic_0001>

<llo_original>
// kernel: tpu_custom_call.1
$region0: #{tpu_custom_call.1}
  #allocation0 [shape = 'u32[]', space=smem, size = 0x4, offset = 0x4, fixed_abs, tag = 'smem constant byte address 0x4 - core index']
  #allocation1 [shape = 'u32[144,128]{1,0:T(1,128)}', space=vmem, size = 0x12000, scoped, tag = 'internal scratch']
  %s0 = inlined_call_operand.hbm [shape: f32[2,64], index: 0, kind: input, shape index: {}]
  %s1 = inlined_call_operand.hbm [shape: bf16[64,512], index: 1, kind: input, shape index: {}]
  %s2 = inlined_call_operand.vmem [shape: f32[1,512], index: 2, kind: input, shape index: {}]
  %s3 = inlined_call_operand.hbm [shape: bf16[512,512], index: 3, kind: input, shape index: {}]
  %s4 = inlined_call_operand.vmem [shape: f32[1,512], index: 4, kind: input, shape index: {}]
  %s5 = inlined_call_operand.hbm [shape: bf16[512,128], index: 5, kind: input, shape index: {}]
  %s6 = inlined_call_operand.vmem [shape: f32[1,128], index: 6, kind: input, shape index: {}]
  %s7 = inlined_call_operand.hbm [shape: bf16[2,128], index: 7, kind: output, shape index: {}]
  %s8 = sld [smem:[#allocation0]]
  $region54: #{tpu_custom_call.1} parent=0
    _
  %s10 = ssub.s32 1, %s8
  %s11 = scalar_select 0, %s10, %s8
  $region1: #{tpu_custom_call.1} parent=0
    #allocation2 [shape = 'u8[4096]{0}', space=vmem, size = 0x1000, scoped, tag = 'input window, operand 0, single buffered']
    #allocation3 [shape = 's32[1]{0}', space=sflag, size = 0x4, scoped, tag = 'scoped memory for tpu_custom_call.1']
    #allocation4 [shape = 's32[1]{0}', space=sflag, size = 0x4, scoped, tag = 'scoped memory for tpu_custom_call.1']
    #allocation5 [shape = 'u8[65536]{0}', space=vmem, size = 0x10000, scoped, tag = 'input window, operand 1, single buffered']
    #allocation6 [shape = 's32[1]{0}', space=sflag, size = 0x4, scoped, tag = 'scoped memory for tpu_custom_call.1']
    #allocation7 [shape = 'u8[524288]{0}', space=vmem, size = 0x80000, scoped, tag = 'input window, operand 3, single buffered']
    #allocation8 [shape = 'u8[131072]{0}', space=vmem, size = 0x20000, scoped, tag = 'input window, operand 5, single buffered']
    #allocation9 [shape = 's32[1]{0}', space=sflag, size = 0x4, scoped, tag = 'scoped memory for tpu_custom_call.1']
    #allocation10 [shape = 'u8[2048]{0}', space=vmem, size = 0x800, scoped, tag = 'output window, operand 0, single buffered']
    %12 = vsyncpa [#allocation3], 0
    %13 = vsyncpa [#allocation6], 0
    %14 = vsyncpa [#allocation9], 0
    %15 = vsyncpa [#allocation4], 0
    // Predicated region
    $region2: #{tpu_custom_call.1} parent=1 // pred_check
      _
    $region3: #{tpu_custom_call.1} parent=1 // pred_check_branch
      %17 = sbr.rel (0) target = $region5
    $region4: #{tpu_custom_call.1} parent=1 // pred_region
      %s19 = ssub.s32 128, 32
      %20 = vsyncadd [#allocation3], %s19
      %s21 = sshll.u32 [#allocation2], 4
      %s22 = int_to_ptr.vmem [resolvable:$true] %s21
      %27 = dma.hbm_to_vmem [thread:$0]  %s0, 32, %s22, [#allocation3], 32, 32, 2
    $region5: #{tpu_custom_call.1} parent=1 // pred_fallthru
      _
    // Predicated region
    $region6: #{tpu_custom_call.1} parent=1 // pred_check
      _
    $region7: #{tpu_custom_call.1} parent=1 // pred_check_branch
      %29 = sbr.rel (0) target = $region9
    $region8: #{tpu_custom_call.1} parent=1 // pred_region
      %s31 = ssub.s32 2048, 2048
      %32 = vsyncadd [#allocation6], %s31
      %s33 = sshll.u32 [#allocation5], 4
      %s34 = int_to_ptr.vmem [resolvable:$true] %s33
      %39 = dma.hbm_to_vmem [thread:$0]  %s1, 2048, %s34, [#allocation6], 256, 256, 16
    $region9: #{tpu_custom_call.1} parent=1 // pred_fallthru
      _
    // Predicated region
    $region10: #{tpu_custom_call.1} parent=1 // pred_check
      _
    $region11: #{tpu_custom_call.1} parent=1 // pred_check_branch
      %41 = sbr.rel (0) target = $region13
    $region12: #{tpu_custom_call.1} parent=1 // pred_region
      _
    $region13: #{tpu_custom_call.1} parent=1 // pred_fallthru
      _
    // Predicated region
    $region14: #{tpu_custom_call.1} parent=1 // pred_check
      _
    $region15: #{tpu_custom_call.1} parent=1 // pred_check_branch
      %43 = sbr.rel (0) target = $region17
    $region16: #{tpu_custom_call.1} parent=1 // pred_region
      %s45 = ssub.s32 16384, 16384
      %46 = vsyncadd [#allocation6], %s45
      %s47 = sshll.u32 [#allocation7], 4
      %s48 = int_to_ptr.vmem [resolvable:$true] %s47
      %53 = dma.hbm_to_vmem [thread:$0]  %s3, 16384, %s48, [#allocation6], 256, 256, 16
    $region17: #{tpu_custom_call.1} parent=1 // pred_fallthru
      _
    // Predicated region
    $region18: #{tpu_custom_call.1} parent=1 // pred_check
      _
    $region19: #{tpu_custom_call.1} parent=1 // pred_check_branch
      %55 = sbr.rel (0) target = $region21
    $region20: #{tpu_custom_call.1} parent=1 // pred_region
      _
    $region21: #{tpu_custom_call.1} parent=1 // pred_fallthru
      _
    // Predicated region
    $region22: #{tpu_custom_call.1} parent=1 // pred_check
      _
    $region23: #{tpu_custom_call.1} parent=1 // pred_check_branch
      %57 = sbr.rel (0) target = $region25
    $region24: #{tpu_custom_call.1} parent=1 // pred_region
      %s59 = ssub.s32 4096, 4096
      %60 = vsyncadd [#allocation9], %s59
      %s61 = sshll.u32 [#allocation8], 4
      %s62 = int_to_ptr.vmem [resolvable:$true] %s61
      %67 = dma.hbm_to_vmem [thread:$0]  %s5, 4096, %s62, [#allocation9], 64, 64, 4
    $region25: #{tpu_custom_call.1} parent=1 // pred_fallthru
      _
    // Predicated region
    $region26: #{tpu_custom_call.1} parent=1 // pred_check
      _
    $region27: #{tpu_custom_call.1} parent=1 // pred_check_branch
      %69 = sbr.rel (0) target = $region29
    $region28: #{tpu_custom_call.1} parent=1 // pred_region
      _
    $region29: #{tpu_custom_call.1} parent=1 // pred_fallthru
      _
    // Predicated region
    $region30: #{tpu_custom_call.1} parent=1 // pred_check
      _
    $region31: #{tpu_custom_call.1} parent=1 // pred_check_branch
      %71 = sbr.rel (0) target = $region33
    $region32: #{tpu_custom_call.1} parent=1 // pred_region
      %72 = dma.done [#allocation3], 128
    $region33: #{tpu_custom_call.1} parent=1 // pred_fallthru
      _
    // Predicated region
    $region34: #{tpu_custom_call.1} parent=1 // pred_check
      _
    $region35: #{tpu_custom_call.1} parent=1 // pred_check_branch
      %74 = sbr.rel (0) target = $region37
    $region36: #{tpu_custom_call.1} parent=1 // pred_region
      %75 = dma.done [#allocation6], 2048
    $region37: #{tpu_custom_call.1} parent=1 // pred_fallthru
      _
    // Predicated region
    $region38: #{tpu_custom_call.1} parent=1 // pred_check
      _
    $region39: #{tpu_custom_call.1} parent=1 // pred_check_branch
      %77 = sbr.rel (0) target = $region41
    $region40: #{tpu_custom_call.1} parent=1 // pred_region
      %78 = dma.done [#allocation6], 16384
    $region41: #{tpu_custom_call.1} parent=1 // pred_fallthru
      _
    // Predicated region
    $region42: #{tpu_custom_call.1} parent=1 // pred_check
      _
    $region43: #{tpu_custom_call.1} parent=1 // pred_check_branch
      %80 = sbr.rel (0) target = $region45
    $region44: #{tpu_custom_call.1} parent=1 // pred_region
      %81 = dma.done [#allocation9], 4096
    $region45: #{tpu_custom_call.1} parent=1 // pred_fallthru
      _
    %v83 = vld [vmem:[#allocation2] sm:$0xff]
    %v84 = vpack.c.bf16 %v83, %v83
    %v85 = vld [vmem:[#allocation5] sm:$0xff]
    %v86 = vld [vmem:[#allocation5 + $0x8] sm:$0xff]
    %v87 = vld [vmem:[#allocation5 + $0x10] sm:$0xff]
    %v88 = vld [vmem:[#allocation5 + $0x18] sm:$0xff]
    %v89 = vld [vmem:[#allocation5 + $0x20] sm:$0xff]
    %v90 = vld [vmem:[#allocation5 + $0x28] sm:$0xff]
    %v91 = vld [vmem:[#allocation5 + $0x30] sm:$0xff]
    %v92 = vld [vmem:[#allocation5 + $0x38] sm:$0xff]
    %v93 = vld [vmem:[#allocation5 + $0x40] sm:$0xff]
    %v94 = vld [vmem:[#allocation5 + $0x48] sm:$0xff]
    %v95 = vld [vmem:[#allocation5 + $0x50] sm:$0xff]
    %v96 = vld [vmem:[#allocation5 + $0x58] sm:$0xff]
    %v97 = vld [vmem:[#allocation5 + $0x60] sm:$0xff]
    %v98 = vld [vmem:[#allocation5 + $0x68] sm:$0xff]
    %v99 = vld [vmem:[#allocation5 + $0x70] sm:$0xff]
    %v100 = vld [vmem:[#allocation5 + $0x78] sm:$0xff]
    %v101 = vld [vmem:[%s2] sm:$0xf]
    %v103 = vlaneseq
    %v104 = vshrl.u32 %v103, 7
    %v105 = vsub.s32 0, %v104
    %v106 = vrot.slane %v101, %v105
    %v107 = vlaneseq
    %v108 = vshrl.u32 %v107, 7
    %v109 = vsub.s32 1, %v108
    %v110 = vrot.slane %v101, %v109
    %v111 = vlaneseq
    %v112 = vshrl.u32 %v111, 7
    %v113 = vsub.s32 2, %v112
    %v114 = vrot.slane %v101, %v113
    %v115 = vlaneseq
    %v116 = vshrl.u32 %v115, 7
    %v117 = vsub.s32 3, %v116
    %v118 = vrot.slane %v101, %v117
    %v139 = vunpack.c.l.b16 %v85
    %v140 = vunpack.c.h.b16 %v85
    %v141 = vunpack.c.l.b16 %v86
    %v142 = vunpack.c.h.b16 %v86
    %v143 = vunpack.c.l.b16 %v87
    %v144 = vunpack.c.h.b16 %v87
    %v145 = vunpack.c.l.b16 %v88
    %v146 = vunpack.c.h.b16 %v88
    %v147 = vunpack.c.l.b16 %v89
    %v148 = vunpack.c.h.b16 %v89
    %v149 = vunpack.c.l.b16 %v90
    %v150 = vunpack.c.h.b16 %v90
    %v151 = vunpack.c.l.b16 %v91
    %v152 = vunpack.c.h.b16 %v91
    %v153 = vunpack.c.l.b16 %v92
    %v154 = vunpack.c.h.b16 %v92
    %v155 = vunpack.c.l.b16 %v93
    %v156 = vunpack.c.h.b16 %v93
    %v157 = vunpack.c.l.b16 %v94
    %v158 = vunpack.c.h.b16 %v94
    %v159 = vunpack.c.l.b16 %v95
    %v160 = vunpack.c.h.b16 %v95
    %v161 = vunpack.c.l.b16 %v96
    %v162 = vunpack.c.h.b16 %v96
    %v163 = vunpack.c.l.b16 %v97
    %v164 = vunpack.c.h.b16 %v97
    %v165 = vunpack.c.l.b16 %v98
    %v166 = vunpack.c.h.b16 %v98
    %v167 = vunpack.c.l.b16 %v99
    %v168 = vunpack.c.h.b16 %v99
    %v169 = vunpack.c.l.b16 %v100
    %v170 = vunpack.c.h.b16 %v100
    %v171 = vpack.c.b16 %v143, %v139
    %v172 = vpack.c.b16 %v144, %v140
    %v173 = vpack.c.b16 %v145, %v141
    %v174 = vpack.c.b16 %v146, %v142
    %v175 = vpack.c.b16 %v151, %v147
    %v176 = vpack.c.b16 %v152, %v148
    %v177 = vpack.c.b16 %v153, %v149
    %v178 = vpack.c.b16 %v154, %v150
    %v179 = vpack.c.b16 %v159, %v155
    %v180 = vpack.c.b16 %v160, %v156
    %v181 = vpack.c.b16 %v161, %v157
    %v182 = vpack.c.b16 %v162, %v158
    %v183 = vpack.c.b16 %v167, %v163
    %v184 = vpack.c.b16 %v168, %v164
    %v185 = vpack.c.b16 %v169, %v165
    %v186 = vpack.c.b16 %v170, %v166
    %vm203 = vcmask 523264
    %v205 = vsel %vm203, %v84, 0
    %207 = vmatprep.subr.bf16.mxu0 %v172
    %208 = vmatpush1.bf16.msra.mxu0 %v171
    %209 = vmatprep.subr.bf16.mxu0 %v176
    %210 = vmatpush1.bf16.msra.mxu0 %v175
    %211 = vmatprep.subr.bf16.mxu0 %v180
    %212 = vmatpush1.bf16.msra.mxu0 %v179
    %213 = vmatprep.subr.bf16.mxu0 %v184
    %214 = vmatpush1.bf16.msra.mxu0 %v183
    %215 = vmatprep.subr.bf16.mxu0 0
    %216 = vmatpush1.bf16.msra.mxu0 0
    %217 = vmatprep.subr.bf16.mxu0 0
    %218 = vmatpush1.bf16.msra.mxu0 0
    %219 = vmatprep.subr.bf16.mxu0 0
    %220 = vmatpush1.bf16.msra.mxu0 0
    %221 = vmatprep.subr.bf16.mxu0 0
    %222 = vmatpush1.bf16.msra.mxu0 0
    %223 = vmatprep.subr.bf16.mxu0 0
    %224 = vmatpush1.bf16.msra.mxu0 0
    %225 = vmatprep.subr.bf16.mxu0 0
    %226 = vmatpush1.bf16.msra.mxu0 0
    %227 = vmatprep.subr.bf16.mxu0 0
    %228 = vmatpush1.bf16.msra.mxu0 0
    %229 = vmatprep.subr.bf16.mxu0 0
    %230 = vmatpush1.bf16.msra.mxu0 0
    %231 = vmatprep.subr.bf16.mxu0 0
    %232 = vmatpush1.bf16.msra.mxu0 0
    %233 = vmatprep.subr.bf16.mxu0 0
    %234 = vmatpush1.bf16.msra.mxu0 0
    %235 = vmatprep.subr.bf16.mxu0 0
    %236 = vmatpush1.bf16.msra.mxu0 0
    %237 = vmatprep.subr.bf16.mxu0 0
    %238 = vmatpush1.bf16.msra.mxu0 0
    %239 = vmatprep.mubr.bf16.mxu0 0
    %240 = vmatmul.mubr.bf16.gmra.mrb[0].mxu0 %v205
    %v241 = vpop.f32.mrb[0].mxu0
    %v242 = vadd.f32 %v106, %v241
    %v243 = vpop.f32.mrb[0].mxu0
    %v244 = vadd.f32 %v110, %v243
    %v245 = vpop.f32.mrb[0].mxu0
    %v246 = vpop.f32.mrb[0].mxu0
    %247 = vdwg.mxu0
    %248 = vmatprep.subr.bf16.mxu0 %v174
    %249 = vmatpush1.bf16.msra.mxu0 %v173
    %250 = vmatprep.subr.bf16.mxu0 %v178
    %251 = vmatpush1.bf16.msra.mxu0 %v177
    %252 = vmatprep.subr.bf16.mxu0 %v182
    %253 = vmatpush1.bf16.msra.mxu0 %v181
    %254 = vmatprep.subr.bf16.mxu0 %v186
    %255 = vmatpush1.bf16.msra.mxu0 %v185
    %256 = vmatprep.subr.bf16.mxu0 0
    %257 = vmatpush1.bf16.msra.mxu0 0
    %258 = vmatprep.subr.bf16.mxu0 0
    %259 = vmatpush1.bf16.msra.mxu0 0
    %260 = vmatprep.subr.bf16.mxu0 0
    %261 = vmatpush1.bf16.msra.mxu0 0
    %262 = vmatprep.subr.bf16.mxu0 0
    %263 = vmatpush1.bf16.msra.mxu0 0
    %264 = vmatprep.subr.bf16.mxu0 0
    %265 = vmatpush1.bf16.msra.mxu0 0
    %266 = vmatprep.subr.bf16.mxu0 0
    %267 = vmatpush1.bf16.msra.mxu0 0
    %268 = vmatprep.subr.bf16.mxu0 0
    %269 = vmatpush1.bf16.msra.mxu0 0
    %270 = vmatprep.subr.bf16.mxu0 0
    %271 = vmatpush1.bf16.msra.mxu0 0
    %272 = vmatprep.subr.bf16.mxu0 0
    %273 = vmatpush1.bf16.msra.mxu0 0
    %274 = vmatprep.subr.bf16.mxu0 0
    %275 = vmatpush1.bf16.msra.mxu0 0
    %276 = vmatprep.subr.bf16.mxu0 0
    %277 = vmatpush1.bf16.msra.mxu0 0
    %278 = vmatprep.subr.bf16.mxu0 0
    %279 = vmatpush1.bf16.msra.mxu0 0
    %280 = vmatprep.mubr.bf16.mxu0 0
    %281 = vmatmul.mubr.bf16.gmra.mrb[0].mxu0 %v205
    %v282 = vpop.f32.mrb[0].mxu0
    %v283 = vadd.f32 %v114, %v282
    %v284 = vpop.f32.mrb[0].mxu0
    %v285 = vadd.f32 %v118, %v284
    %v286 = vpop.f32.mrb[0].mxu0
    %v287 = vpop.f32.mrb[0].mxu0
    %288 = vdwg.mxu0
    %v289 = vmax.f32 %v242, 0.0
    %v290 = vmax.f32 %v244, 0.0
    %v291 = vmax.f32 %v283, 0.0
    %v292 = vmax.f32 %v285, 0.0
    %v293 = vpack.c.bf16 %v289, %v289
    %v294 = vpack.c.bf16 %v290, %v290
    %v295 = vpack.c.bf16 %v291, %v291
    %v296 = vpack.c.bf16 %v292, %v292
    %v297 = vld [vmem:[#allocation7] sm:$0xff]
    %v298 = vld [vmem:[#allocation7 + $0x8] sm:$0xff]
    %v299 = vld [vmem:[#allocation7 + $0x10] sm:$0xff]
    %v300 = vld [vmem:[#allocation7 + $0x18] sm:$0xff]
    %v301 = vld [vmem:[#allocation7 + $0x20] sm:$0xff]
    %v302 = vld [vmem:[#allocation7 + $0x28] sm:$0xff]
    %v303 = vld [vmem:[#allocation7 + $0x30] sm:$0xff]
    %v304 = vld [vmem:[#allocation7 + $0x38] sm:$0xff]
    %v305 = vld [vmem:[#allocation7 + $0x40] sm:$0xff]
    %v306 = vld [vmem:[#allocation7 + $0x48] sm:$0xff]
    %v307 = vld [vmem:[#allocation7 + $0x50] sm:$0xff]
    %v308 = vld [vmem:[#allocation7 + $0x58] sm:$0xff]
    %v309 = vld [vmem:[#allocation7 + $0x60] sm:$0xff]
    %v310 = vld [vmem:[#allocation7 + $0x68] sm:$0xff]
    %v311 = vld [vmem:[#allocation7 + $0x70] sm:$0xff]
    %v312 = vld [vmem:[#allocation7 + $0x78] sm:$0xff]
    %v313 = vld [vmem:[#allocation7 + $0x80] sm:$0xff]
    %v314 = vld [vmem:[#allocation7 + $0x88] sm:$0xff]
    %v315 = vld [vmem:[#allocation7 + $0x90] sm:$0xff]
    %v316 = vld [vmem:[#allocation7 + $0x98] sm:$0xff]
    %v317 = vld [vmem:[#allocation7 + $0xa0] sm:$0xff]
    %v318 = vld [vmem:[#allocation7 + $0xa8] sm:$0xff]
    %v319 = vld [vmem:[#allocation7 + $0xb0] sm:$0xff]
    %v320 = vld [vmem:[#allocation7 + $0xb8] sm:$0xff]
    %v321 = vld [vmem:[#allocation7 + $0xc0] sm:$0xff]
    %v322 = vld [vmem:[#allocation7 + $0xc8] sm:$0xff]
    %v323 = vld [vmem:[#allocation7 + $0xd0] sm:$0xff]
    %v324 = vld [vmem:[#allocation7 + $0xd8] sm:$0xff]
    %v325 = vld [vmem:[#allocation7 + $0xe0] sm:$0xff]
    %v326 = vld [vmem:[#allocation7 + $0xe8] sm:$0xff]
    %v327 = vld [vmem:[#allocation7 + $0xf0] sm:$0xff]
    %v328 = vld [vmem:[#allocation7 + $0xf8] sm:$0xff]
    %v329 = vld [vmem:[#allocation7 + $0x100] sm:$0xff]
    %v330 = vld [vmem:[#allocation7 + $0x108] sm:$0xff]
    %v331 = vld [vmem:[#allocation7 + $0x110] sm:$0xff]
    %v332 = vld [vmem:[#allocation7 + $0x118] sm:$0xff]
    %v333 = vld [vmem:[#allocation7 + $0x120] sm:$0xff]
    %v334 = vld [vmem:[#allocation7 + $0x128] sm:$0xff]
    %v335 = vld [vmem:[#allocation7 + $0x130] sm:$0xff]
    %v336 = vld [vmem:[#allocation7 + $0x138] sm:$0xff]
    %v337 = vld [vmem:[#allocation7 + $0x140] sm:$0xff]
    %v338 = vld [vmem:[#allocation7 + $0x148] sm:$0xff]
    %v339 = vld [vmem:[#allocation7 + $0x150] sm:$0xff]
    %v340 = vld [vmem:[#allocation7 + $0x158] sm:$0xff]
    %v341 = vld [vmem:[#allocation7 + $0x160] sm:$0xff]
    %v342 = vld [vmem:[#allocation7 + $0x168] sm:$0xff]
    %v343 = vld [vmem:[#allocation7 + $0x170] sm:$0xff]
    %v344 = vld [vmem:[#allocation7 + $0x178] sm:$0xff]
    %v345 = vld [vmem:[#allocation7 + $0x180] sm:$0xff]
    %v346 = vld [vmem:[#allocation7 + $0x188] sm:$0xff]
    %v347 = vld [vmem:[#allocation7 + $0x190] sm:$0xff]
    %v348 = vld [vmem:[#allocation7 + $0x198] sm:$0xff]
    %v349 = vld [vmem:[#allocation7 + $0x1a0] sm:$0xff]
    %v350 = vld [vmem:[#allocation7 + $0x1a8] sm:$0xff]
    %v351 = vld [vmem:[#allocation7 + $0x1b0] sm:$0xff]
    %v352 = vld [vmem:[#allocation7 + $0x1b8] sm:$0xff]
    %v353 = vld [vmem:[#allocation7 + $0x1c0] sm:$0xff]
    %v354 = vld [vmem:[#allocation7 + $0x1c8] sm:$0xff]
    %v355 = vld [vmem:[#allocation7 + $0x1d0] sm:$0xff]
    %v356 = vld [vmem:[#allocation7 + $0x1d8] sm:$0xff]
    %v357 = vld [vmem:[#allocation7 + $0x1e0] sm:$0xff]
    %v358 = vld [vmem:[#allocation7 + $0x1e8] sm:$0xff]
    %v359 = vld [vmem:[#allocation7 + $0x1f0] sm:$0xff]
    %v360 = vld [vmem:[#allocation7 + $0x1f8] sm:$0xff]
    %v361 = vld [vmem:[#allocation7 + $0x200] sm:$0xff]
    %v362 = vld [vmem:[#allocation7 + $0x208] sm:$0xff]
    %v363 = vld [vmem:[#allocation7 + $0x210] sm:$0xff]
    %v364 = vld [vmem:[#allocation7 + $0x218] sm:$0xff]
    %v365 = vld [vmem:[#allocation7 + $0x220] sm:$0xff]
    %v366 = vld [vmem:[#allocation7 + $0x228] sm:$0xff]
    %v367 = vld [vmem:[#allocation7 + $0x230] sm:$0xff]
    %v368 = vld [vmem:[#allocation7 + $0x238] sm:$0xff]
    %v369 = vld [vmem:[#allocation7 + $0x240] sm:$0xff]
    %v370 = vld [vmem:[#allocation7 + $0x248] sm:$0xff]
    %v371 = vld [vmem:[#allocation7 + $0x250] sm:$0xff]
    %v372 = vld [vmem:[#allocation7 + $0x258] sm:$0xff]
    %v373 = vld [vmem:[#allocation7 + $0x260] sm:$0xff]
    %v374 = vld [vmem:[#allocation7 + $0x268] sm:$0xff]
    %v375 = vld [vmem:[#allocation7 + $0x270] sm:$0xff]
    %v376 = vld [vmem:[#allocation7 + $0x278] sm:$0xff]
    %v377 = vld [vmem:[#allocation7 + $0x280] sm:$0xff]
    %v378 = vld [vmem:[#allocation7 + $0x288] sm:$0xff]
    %v379 = vld [vmem:[#allocation7 + $0x290] sm:$0xff]
    %v380 = vld [vmem:[#allocation7 + $0x298] sm:$0xff]
    %v381 = vld [vmem:[#allocation7 + $0x2a0] sm:$0xff]
    %v382 = vld [vmem:[#allocation7 + $0x2a8] sm:$0xff]
    %v383 = vld [vmem:[#allocation7 + $0x2b0] sm:$0xff]
    %v384 = vld [vmem:[#allocation7 + $0x2b8] sm:$0xff]
    %v385 = vld [vmem:[#allocation7 + $0x2c0] sm:$0xff]
    %v386 = vld [vmem:[#allocation7 + $0x2c8] sm:$0xff]
    %v387 = vld [vmem:[#allocation7 + $0x2d0] sm:$0xff]
    %v388 = vld [vmem:[#allocation7 + $0x2d8] sm:$0xff]
    %v389 = vld [vmem:[#allocation7 + $0x2e0] sm:$0xff]
    %v390 = vld [vmem:[#allocation7 + $0x2e8] sm:$0xff]
    %v391 = vld [vmem:[#allocation7 + $0x2f0] sm:$0xff]
    %v392 = vld [vmem:[#allocation7 + $0x2f8] sm:$0xff]
    %v393 = vld [vmem:[#allocation7 + $0x300] sm:$0xff]
    %v394 = vld [vmem:[#allocation7 + $0x308] sm:$0xff]
    %v395 = vld [vmem:[#allocation7 + $0x310] sm:$0xff]
    %v396 = vld [vmem:[#allocation7 + $0x318] sm:$0xff]
    %v397 = vld [vmem:[#allocation7 + $0x320] sm:$0xff]
    %v398 = vld [vmem:[#allocation7 + $0x328] sm:$0xff]
    %v399 = vld [vmem:[#allocation7 + $0x330] sm:$0xff]
    %v400 = vld [vmem:[#allocation7 + $0x338] sm:$0xff]
    %v401 = vld [vmem:[#allocation7 + $0x340] sm:$0xff]
    %v402 = vld [vmem:[#allocation7 + $0x348] sm:$0xff]
    %v403 = vld [vmem:[#allocation7 + $0x350] sm:$0xff]
    %v404 = vld [vmem:[#allocation7 + $0x358] sm:$0xff]
    %v405 = vld [vmem:[#allocation7 + $0x360] sm:$0xff]
    %v406 = vld [vmem:[#allocation7 + $0x368] sm:$0xff]
    %v407 = vld [vmem:[#allocation7 + $0x370] sm:$0xff]
    %v408 = vld [vmem:[#allocation7 + $0x378] sm:$0xff]
    %v409 = vld [vmem:[#allocation7 + $0x380] sm:$0xff]
    %v410 = vld [vmem:[#allocation7 + $0x388] sm:$0xff]
    %v411 = vld [vmem:[#allocation7 + $0x390] sm:$0xff]
    %v412 = vld [vmem:[#allocation7 + $0x398] sm:$0xff]
    %v413 = vld [vmem:[#allocation7 + $0x3a0] sm:$0xff]
    %v414 = vld [vmem:[#allocation7 + $0x3a8] sm:$0xff]
    %v415 = vld [vmem:[#allocation7 + $0x3b0] sm:$0xff]
    %v416 = vld [vmem:[#allocation7 + $0x3b8] sm:$0xff]
    %v417 = vld [vmem:[#allocation7 + $0x3c0] sm:$0xff]
    %v418 = vld [vmem:[#allocation7 + $0x3c8] sm:$0xff]
    %v419 = vld [vmem:[#allocation7 + $0x3d0] sm:$0xff]
    %v420 = vld [vmem:[#allocation7 + $0x3d8] sm:$0xff]
    %v421 = vld [vmem:[#allocation7 + $0x3e0] sm:$0xff]
    %v422 = vld [vmem:[#allocation7 + $0x3e8] sm:$0xff]
    %v423 = vld [vmem:[#allocation7 + $0x3f0] sm:$0xff]
    %v424 = vld [vmem:[#allocation7 + $0x3f8] sm:$0xff]
    %v425 = vld [vmem:[%s4] sm:$0xf]
    %v427 = vlaneseq
    %v428 = vshrl.u32 %v427, 7
    %v429 = vsub.s32 0, %v428
    %v430 = vrot.slane %v425, %v429
    %v431 = vlaneseq
    %v432 = vshrl.u32 %v431, 7
    %v433 = vsub.s32 1, %v432
    %v434 = vrot.slane %v425, %v433
    %v435 = vlaneseq
    %v436 = vshrl.u32 %v435, 7
    %v437 = vsub.s32 2, %v436
    %v438 = vrot.slane %v425, %v437
    %v439 = vlaneseq
    %v440 = vshrl.u32 %v439, 7
    %v441 = vsub.s32 3, %v440
    %v442 = vrot.slane %v425, %v441
    %v575 = vunpack.c.l.b16 %v297
    %v576 = vunpack.c.h.b16 %v297
    %v577 = vunpack.c.l.b16 %v298
    %v578 = vunpack.c.h.b16 %v298
    %v579 = vunpack.c.l.b16 %v299
    %v580 = vunpack.c.h.b16 %v299
    %v581 = vunpack.c.l.b16 %v300
    %v582 = vunpack.c.h.b16 %v300
    %v583 = vunpack.c.l.b16 %v301
    %v584 = vunpack.c.h.b16 %v301
    %v585 = vunpack.c.l.b16 %v302
    %v586 = vunpack.c.h.b16 %v302
    %v587 = vunpack.c.l.b16 %v303
    %v588 = vunpack.c.h.b16 %v303
    %v589 = vunpack.c.l.b16 %v304
    %v590 = vunpack.c.h.b16 %v304
    %v591 = vunpack.c.l.b16 %v305
    %v592 = vunpack.c.h.b16 %v305
    %v593 = vunpack.c.l.b16 %v306
    %v594 = vunpack.c.h.b16 %v306
    %v595 = vunpack.c.l.b16 %v307
    %v596 = vunpack.c.h.b16 %v307
    %v597 = vunpack.c.l.b16 %v308
    %v598 = vunpack.c.h.b16 %v308
    %v599 = vunpack.c.l.b16 %v309
    %v600 = vunpack.c.h.b16 %v309
    %v601 = vunpack.c.l.b16 %v310
    %v602 = vunpack.c.h.b16 %v310
    %v603 = vunpack.c.l.b16 %v311
    %v604 = vunpack.c.h.b16 %v311
    %v605 = vunpack.c.l.b16 %v312
    %v606 = vunpack.c.h.b16 %v312
    %v607 = vunpack.c.l.b16 %v313
    %v608 = vunpack.c.h.b16 %v313
    %v609 = vunpack.c.l.b16 %v314
    %v610 = vunpack.c.h.b16 %v314
    %v611 = vunpack.c.l.b16 %v315
    %v612 = vunpack.c.h.b16 %v315
    %v613 = vunpack.c.l.b16 %v316
    %v614 = vunpack.c.h.b16 %v316
    %v615 = vunpack.c.l.b16 %v317
    %v616 = vunpack.c.h.b16 %v317
    %v617 = vunpack.c.l.b16 %v318
    %v618 = vunpack.c.h.b16 %v318
    %v619 = vunpack.c.l.b16 %v319
    %v620 = vunpack.c.h.b16 %v319
    %v621 = vunpack.c.l.b16 %v320
    %v622 = vunpack.c.h.b16 %v320
    %v623 = vunpack.c.l.b16 %v321
    %v624 = vunpack.c.h.b16 %v321
    %v625 = vunpack.c.l.b16 %v322
    %v626 = vunpack.c.h.b16 %v322
    %v627 = vunpack.c.l.b16 %v323
    %v628 = vunpack.c.h.b16 %v323
    %v629 = vunpack.c.l.b16 %v324
    %v630 = vunpack.c.h.b16 %v324
    %v631 = vunpack.c.l.b16 %v325
    %v632 = vunpack.c.h.b16 %v325
    %v633 = vunpack.c.l.b16 %v326
    %v634 = vunpack.c.h.b16 %v326
    %v635 = vunpack.c.l.b16 %v327
    %v636 = vunpack.c.h.b16 %v327
    %v637 = vunpack.c.l.b16 %v328
    %v638 = vunpack.c.h.b16 %v328
    %v639 = vunpack.c.l.b16 %v329
    %v640 = vunpack.c.h.b16 %v329
    %v641 = vunpack.c.l.b16 %v330
    %v642 = vunpack.c.h.b16 %v330
    %v643 = vunpack.c.l.b16 %v331
    %v644 = vunpack.c.h.b16 %v331
    %v645 = vunpack.c.l.b16 %v332
    %v646 = vunpack.c.h.b16 %v332
    %v647 = vunpack.c.l.b16 %v333
    %v648 = vunpack.c.h.b16 %v333
    %v649 = vunpack.c.l.b16 %v334
    %v650 = vunpack.c.h.b16 %v334
    %v651 = vunpack.c.l.b16 %v335
    %v652 = vunpack.c.h.b16 %v335
    %v653 = vunpack.c.l.b16 %v336
    %v654 = vunpack.c.h.b16 %v336
    %v655 = vunpack.c.l.b16 %v337
    %v656 = vunpack.c.h.b16 %v337
    %v657 = vunpack.c.l.b16 %v338
    %v658 = vunpack.c.h.b16 %v338
    %v659 = vunpack.c.l.b16 %v339
    %v660 = vunpack.c.h.b16 %v339
    %v661 = vunpack.c.l.b16 %v340
    %v662 = vunpack.c.h.b16 %v340
    %v663 = vunpack.c.l.b16 %v341
    %v664 = vunpack.c.h.b16 %v341
    %v665 = vunpack.c.l.b16 %v342
    %v666 = vunpack.c.h.b16 %v342
    %v667 = vunpack.c.l.b16 %v343
    %v668 = vunpack.c.h.b16 %v343
    %v669 = vunpack.c.l.b16 %v344
    %v670 = vunpack.c.h.b16 %v344
    %v671 = vunpack.c.l.b16 %v345
    %v672 = vunpack.c.h.b16 %v345
    %v673 = vunpack.c.l.b16 %v346
    %v674 = vunpack.c.h.b16 %v346
    %v675 = vunpack.c.l.b16 %v347
    %v676 = vunpack.c.h.b16 %v347
    %v677 = vunpack.c.l.b16 %v348
    %v678 = vunpack.c.h.b16 %v348
    %v679 = vunpack.c.l.b16 %v349
    %v680 = vunpack.c.h.b16 %v349
    %v681 = vunpack.c.l.b16 %v350
    %v682 = vunpack.c.h.b16 %v350
    %v683 = vunpack.c.l.b16 %v351
    %v684 = vunpack.c.h.b16 %v351
    %v685 = vunpack.c.l.b16 %v352
    %v686 = vunpack.c.h.b16 %v352
    %v687 = vunpack.c.l.b16 %v353
    %v688 = vunpack.c.h.b16 %v353
    %v689 = vunpack.c.l.b16 %v354
    %v690 = vunpack.c.h.b16 %v354
    %v691 = vunpack.c.l.b16 %v355
    %v692 = vunpack.c.h.b16 %v355
    %v693 = vunpack.c.l.b16 %v356
    %v694 = vunpack.c.h.b16 %v356
    %v695 = vunpack.c.l.b16 %v357
    %v696 = vunpack.c.h.b16 %v357
    %v697 = vunpack.c.l.b16 %v358
    %v698 = vunpack.c.h.b16 %v358
    %v699 = vunpack.c.l.b16 %v359
    %v700 = vunpack.c.h.b16 %v359
    %v701 = vunpack.c.l.b16 %v360
    %v702 = vunpack.c.h.b16 %v360
    %v703 = vunpack.c.l.b16 %v361
    %v704 = vunpack.c.h.b16 %v361
    %v705 = vunpack.c.l.b16 %v362
    %v706 = vunpack.c.h.b16 %v362
    %v707 = vunpack.c.l.b16 %v363
    %v708 = vunpack.c.h.b16 %v363
    %v709 = vunpack.c.l.b16 %v364
    %v710 = vunpack.c.h.b16 %v364
    %v711 = vunpack.c.l.b16 %v365
    %v712 = vunpack.c.h.b16 %v365
    %v713 = vunpack.c.l.b16 %v366
    %v714 = vunpack.c.h.b16 %v366
    %v715 = vunpack.c.l.b16 %v367
    %v716 = vunpack.c.h.b16 %v367
    %v717 = vunpack.c.l.b16 %v368
    %v718 = vunpack.c.h.b16 %v368
    %v719 = vunpack.c.l.b16 %v369
    %v720 = vunpack.c.h.b16 %v369
    %v721 = vunpack.c.l.b16 %v370
    %v722 = vunpack.c.h.b16 %v370
    %v723 = vunpack.c.l.b16 %v371
    %v724 = vunpack.c.h.b16 %v371
    %v725 = vunpack.c.l.b16 %v372
    %v726 = vunpack.c.h.b16 %v372
    %v727 = vunpack.c.l.b16 %v373
    %v728 = vunpack.c.h.b16 %v373
    %v729 = vunpack.c.l.b16 %v374
    %v730 = vunpack.c.h.b16 %v374
    %v731 = vunpack.c.l.b16 %v375
    %v732 = vunpack.c.h.b16 %v375
    %v733 = vunpack.c.l.b16 %v376
    %v734 = vunpack.c.h.b16 %v376
    %v735 = vunpack.c.l.b16 %v377
    %v736 = vunpack.c.h.b16 %v377
    %v737 = vunpack.c.l.b16 %v378
    %v738 = vunpack.c.h.b16 %v378
    %v739 = vunpack.c.l.b16 %v379
    %v740 = vunpack.c.h.b16 %v379
    %v741 = vunpack.c.l.b16 %v380
    %v742 = vunpack.c.h.b16 %v380
    %v743 = vunpack.c.l.b16 %v381
    %v744 = vunpack.c.h.b16 %v381
    %v745 = vunpack.c.l.b16 %v382
    %v746 = vunpack.c.h.b16 %v382
    %v747 = vunpack.c.l.b16 %v383
    %v748 = vunpack.c.h.b16 %v383
    %v749 = vunpack.c.l.b16 %v384
    %v750 = vunpack.c.h.b16 %v384
    %v751 = vunpack.c.l.b16 %v385
    %v752 = vunpack.c.h.b16 %v385
    %v753 = vunpack.c.l.b16 %v386
    %v754 = vunpack.c.h.b16 %v386
    %v755 = vunpack.c.l.b16 %v387
    %v756 = vunpack.c.h.b16 %v387
    %v757 = vunpack.c.l.b16 %v388
    %v758 = vunpack.c.h.b16 %v388
    %v759 = vunpack.c.l.b16 %v389
    %v760 = vunpack.c.h.b16 %v389
    %v761 = vunpack.c.l.b16 %v390
    %v762 = vunpack.c.h.b16 %v390
    %v763 = vunpack.c.l.b16 %v391
    %v764 = vunpack.c.h.b16 %v391
    %v765 = vunpack.c.l.b16 %v392
    %v766 = vunpack.c.h.b16 %v392
    %v767 = vunpack.c.l.b16 %v393
    %v768 = vunpack.c.h.b16 %v393
    %v769 = vunpack.c.l.b16 %v394
    %v770 = vunpack.c.h.b16 %v394
    %v771 = vunpack.c.l.b16 %v395
    %v772 = vunpack.c.h.b16 %v395
    %v773 = vunpack.c.l.b16 %v396
    %v774 = vunpack.c.h.b16 %v396
    %v775 = vunpack.c.l.b16 %v397
    %v776 = vunpack.c.h.b16 %v397
    %v777 = vunpack.c.l.b16 %v398
    %v778 = vunpack.c.h.b16 %v398
    %v779 = vunpack.c.l.b16 %v399
    %v780 = vunpack.c.h.b16 %v399
    %v781 = vunpack.c.l.b16 %v400
    %v782 = vunpack.c.h.b16 %v400
    %v783 = vunpack.c.l.b16 %v401
    %v784 = vunpack.c.h.b16 %v401
    %v785 = vunpack.c.l.b16 %v402
    %v786 = vunpack.c.h.b16 %v402
    %v787 = vunpack.c.l.b16 %v403
    %v788 = vunpack.c.h.b16 %v403
    %v789 = vunpack.c.l.b16 %v404
    %v790 = vunpack.c.h.b16 %v404
    %v791 = vunpack.c.l.b16 %v405
    %v792 = vunpack.c.h.b16 %v405
    %v793 = vunpack.c.l.b16 %v406
    %v794 = vunpack.c.h.b16 %v406
    %v795 = vunpack.c.l.b16 %v407
    %v796 = vunpack.c.h.b16 %v407
    %v797 = vunpack.c.l.b16 %v408
    %v798 = vunpack.c.h.b16 %v408
    %v799 = vunpack.c.l.b16 %v409
    %v800 = vunpack.c.h.b16 %v409
    %v801 = vunpack.c.l.b16 %v410
    %v802 = vunpack.c.h.b16 %v410
    %v803 = vunpack.c.l.b16 %v411
    %v804 = vunpack.c.h.b16 %v411
    %v805 = vunpack.c.l.b16 %v412
    %v806 = vunpack.c.h.b16 %v412
    %v807 = vunpack.c.l.b16 %v413
    %v808 = vunpack.c.h.b16 %v413
    %v809 = vunpack.c.l.b16 %v414
    %v810 = vunpack.c.h.b16 %v414
    %v811 = vunpack.c.l.b16 %v415
    %v812 = vunpack.c.h.b16 %v415
    %v813 = vunpack.c.l.b16 %v416
    %v814 = vunpack.c.h.b16 %v416
    %v815 = vunpack.c.l.b16 %v417
    %v816 = vunpack.c.h.b16 %v417
    %v817 = vunpack.c.l.b16 %v418
    %v818 = vunpack.c.h.b16 %v418
    %v819 = vunpack.c.l.b16 %v419
    %v820 = vunpack.c.h.b16 %v419
    %v821 = vunpack.c.l.b16 %v420
    %v822 = vunpack.c.h.b16 %v420
    %v823 = vunpack.c.l.b16 %v421
    %v824 = vunpack.c.h.b16 %v421
    %v825 = vunpack.c.l.b16 %v422
    %v826 = vunpack.c.h.b16 %v422
    %v827 = vunpack.c.l.b16 %v423
    %v828 = vunpack.c.h.b16 %v423
    %v829 = vunpack.c.l.b16 %v424
    %v830 = vunpack.c.h.b16 %v424
    %v831 = vpack.c.b16 %v579, %v575
    %v832 = vpack.c.b16 %v580, %v576
    %v833 = vpack.c.b16 %v581, %v577
    %v834 = vpack.c.b16 %v582, %v578
    %v835 = vpack.c.b16 %v587, %v583
    %v836 = vpack.c.b16 %v588, %v584
    %v837 = vpack.c.b16 %v589, %v585
    %v838 = vpack.c.b16 %v590, %v586
    %v839 = vpack.c.b16 %v595, %v591
    %v840 = vpack.c.b16 %v596, %v592
    %v841 = vpack.c.b16 %v597, %v593
    %v842 = vpack.c.b16 %v598, %v594
    %v843 = vpack.c.b16 %v603, %v599
    %v844 = vpack.c.b16 %v604, %v600
    %v845 = vpack.c.b16 %v605, %v601
    %v846 = vpack.c.b16 %v606, %v602
    %v847 = vpack.c.b16 %v611, %v607
    %v848 = vpack.c.b16 %v612, %v608
    %v849 = vpack.c.b16 %v613, %v609
    %v850 = vpack.c.b16 %v614, %v610
    %v851 = vpack.c.b16 %v619, %v615
    %v852 = vpack.c.b16 %v620, %v616
    %v853 = vpack.c.b16 %v621, %v617
    %v854 = vpack.c.b16 %v622, %v618
    %v855 = vpack.c.b16 %v627, %v623
    %v856 = vpack.c.b16 %v628, %v624
    %v857 = vpack.c.b16 %v629, %v625
    %v858 = vpack.c.b16 %v630, %v626
    %v859 = vpack.c.b16 %v635, %v631
    %v860 = vpack.c.b16 %v636, %v632
    %v861 = vpack.c.b16 %v637, %v633
    %v862 = vpack.c.b16 %v638, %v634
    %v863 = vpack.c.b16 %v643, %v639
    %v864 = vpack.c.b16 %v644, %v640
    %v865 = vpack.c.b16 %v645, %v641
    %v866 = vpack.c.b16 %v646, %v642
    %v867 = vpack.c.b16 %v651, %v647
    %v868 = vpack.c.b16 %v652, %v648
    %v869 = vpack.c.b16 %v653, %v649
    %v870 = vpack.c.b16 %v654, %v650
    %v871 = vpack.c.b16 %v659, %v655
    %v872 = vpack.c.b16 %v660, %v656
    %v873 = vpack.c.b16 %v661, %v657
    %v874 = vpack.c.b16 %v662, %v658
    %v875 = vpack.c.b16 %v667, %v663
    %v876 = vpack.c.b16 %v668, %v664
    %v877 = vpack.c.b16 %v669, %v665
    %v878 = vpack.c.b16 %v670, %v666
    %v879 = vpack.c.b16 %v675, %v671
    %v880 = vpack.c.b16 %v676, %v672
    %v881 = vpack.c.b16 %v677, %v673
    %v882 = vpack.c.b16 %v678, %v674
    %v883 = vpack.c.b16 %v683, %v679
    %v884 = vpack.c.b16 %v684, %v680
    %v885 = vpack.c.b16 %v685, %v681
    %v886 = vpack.c.b16 %v686, %v682
    %v887 = vpack.c.b16 %v691, %v687
    %v888 = vpack.c.b16 %v692, %v688
    %v889 = vpack.c.b16 %v693, %v689
    %v890 = vpack.c.b16 %v694, %v690
    %v891 = vpack.c.b16 %v699, %v695
    %v892 = vpack.c.b16 %v700, %v696
    %v893 = vpack.c.b16 %v701, %v697
    %v894 = vpack.c.b16 %v702, %v698
    %v895 = vpack.c.b16 %v707, %v703
    %v896 = vpack.c.b16 %v708, %v704
    %v897 = vpack.c.b16 %v709, %v705
    %v898 = vpack.c.b16 %v710, %v706
    %v899 = vpack.c.b16 %v715, %v711
    %v900 = vpack.c.b16 %v716, %v712
    %v901 = vpack.c.b16 %v717, %v713
    %v902 = vpack.c.b16 %v718, %v714
    %v903 = vpack.c.b16 %v723, %v719
    %v904 = vpack.c.b16 %v724, %v720
    %v905 = vpack.c.b16 %v725, %v721
    %v906 = vpack.c.b16 %v726, %v722
    %v907 = vpack.c.b16 %v731, %v727
    %v908 = vpack.c.b16 %v732, %v728
    %v909 = vpack.c.b16 %v733, %v729
    %v910 = vpack.c.b16 %v734, %v730
    %v911 = vpack.c.b16 %v739, %v735
    %v912 = vpack.c.b16 %v740, %v736
    %v913 = vpack.c.b16 %v741, %v737
    %v914 = vpack.c.b16 %v742, %v738
    %v915 = vpack.c.b16 %v747, %v743
    %v916 = vpack.c.b16 %v748, %v744
    %v917 = vpack.c.b16 %v749, %v745
    %v918 = vpack.c.b16 %v750, %v746
    %v919 = vpack.c.b16 %v755, %v751
    %v920 = vpack.c.b16 %v756, %v752
    %v921 = vpack.c.b16 %v757, %v753
    %v922 = vpack.c.b16 %v758, %v754
    %v923 = vpack.c.b16 %v763, %v759
    %v924 = vpack.c.b16 %v764, %v760
    %v925 = vpack.c.b16 %v765, %v761
    %v926 = vpack.c.b16 %v766, %v762
    %v927 = vpack.c.b16 %v771, %v767
    %v928 = vpack.c.b16 %v772, %v768
    %v929 = vpack.c.b16 %v773, %v769
    %v930 = vpack.c.b16 %v774, %v770
    %v931 = vpack.c.b16 %v779, %v775
    %v932 = vpack.c.b16 %v780, %v776
    %v933 = vpack.c.b16 %v781, %v777
    %v934 = vpack.c.b16 %v782, %v778
    %v935 = vpack.c.b16 %v787, %v783
    %v936 = vpack.c.b16 %v788, %v784
    %v937 = vpack.c.b16 %v789, %v785
    %v938 = vpack.c.b16 %v790, %v786
    %v939 = vpack.c.b16 %v795, %v791
    %v940 = vpack.c.b16 %v796, %v792
    %v941 = vpack.c.b16 %v797, %v793
    %v942 = vpack.c.b16 %v798, %v794
    %v943 = vpack.c.b16 %v803, %v799
    %v944 = vpack.c.b16 %v804, %v800
    %v945 = vpack.c.b16 %v805, %v801
    %v946 = vpack.c.b16 %v806, %v802
    %v947 = vpack.c.b16 %v811, %v807
    %v948 = vpack.c.b16 %v812, %v808
    %v949 = vpack.c.b16 %v813, %v809
    %v950 = vpack.c.b16 %v814, %v810
    %v951 = vpack.c.b16 %v819, %v815
    %v952 = vpack.c.b16 %v820, %v816
    %v953 = vpack.c.b16 %v821, %v817
    %v954 = vpack.c.b16 %v822, %v818
    %v955 = vpack.c.b16 %v827, %v823
    %v956 = vpack.c.b16 %v828, %v824
    %v957 = vpack.c.b16 %v829, %v825
    %v958 = vpack.c.b16 %v830, %v826
    %1087 = vmatprep.subr.bf16.mxu0 %v832
    %1088 = vmatpush1.bf16.msra.mxu0 %v831
    %1089 = vmatprep.subr.bf16.mxu0 %v836
    %1090 = vmatpush1.bf16.msra.mxu0 %v835
    %1091 = vmatprep.subr.bf16.mxu0 %v840
    %1092 = vmatpush1.bf16.msra.mxu0 %v839
    %1093 = vmatprep.subr.bf16.mxu0 %v844
    %1094 = vmatpush1.bf16.msra.mxu0 %v843
    %1095 = vmatprep.subr.bf16.mxu0 %v848
    %1096 = vmatpush1.bf16.msra.mxu0 %v847
    %1097 = vmatprep.subr.bf16.mxu0 %v852
    %1098 = vmatpush1.bf16.msra.mxu0 %v851
    %1099 = vmatprep.subr.bf16.mxu0 %v856
    %1100 = vmatpush1.bf16.msra.mxu0 %v855
    %1101 = vmatprep.subr.bf16.mxu0 %v860
    %1102 = vmatpush1.bf16.msra.mxu0 %v859
    %1103 = vmatprep.subr.bf16.mxu0 %v864
    %1104 = vmatpush1.bf16.msra.mxu0 %v863
    %1105 = vmatprep.subr.bf16.mxu0 %v868
    %1106 = vmatpush1.bf16.msra.mxu0 %v867
    %1107 = vmatprep.subr.bf16.mxu0 %v872
    %1108 = vmatpush1.bf16.msra.mxu0 %v871
    %1109 = vmatprep.subr.bf16.mxu0 %v876
    %1110 = vmatpush1.bf16.msra.mxu0 %v875
    %1111 = vmatprep.subr.bf16.mxu0 %v880
    %1112 = vmatpush1.bf16.msra.mxu0 %v879
    %1113 = vmatprep.subr.bf16.mxu0 %v884
    %1114 = vmatpush1.bf16.msra.mxu0 %v883
    %1115 = vmatprep.subr.bf16.mxu0 %v888
    %1116 = vmatpush1.bf16.msra.mxu0 %v887
    %1117 = vmatprep.subr.bf16.mxu0 %v892
    %1118 = vmatpush1.bf16.msra.mxu0 %v891
    %1119 = vmatprep.mubr.bf16.mxu0 %v294
    %1120 = vmatmul.mubr.bf16.gmra.mrb[0].mxu0 %v293
    %v1121 = vpop.f32.mrb[0].mxu0
    %v1122 = vadd.f32 %v430, %v1121
    %v1123 = vpop.f32.mrb[0].mxu0
    %v1124 = vadd.f32 %v434, %v1123
    %v1125 = vpop.f32.mrb[0].mxu0
    %v1126 = vpop.f32.mrb[0].mxu0
    %1127 = vdwg.mxu0
    %1128 = vmatprep.subr.bf16.mxu0 %v896
    %1129 = vmatpush1.bf16.msra.mxu0 %v895
    %1130 = vmatprep.subr.bf16.mxu0 %v900
    %1131 = vmatpush1.bf16.msra.mxu0 %v899
    %1132 = vmatprep.subr.bf16.mxu0 %v904
    %1133 = vmatpush1.bf16.msra.mxu0 %v903
    %1134 = vmatprep.subr.bf16.mxu0 %v908
    %1135 = vmatpush1.bf16.msra.mxu0 %v907
    %1136 = vmatprep.subr.bf16.mxu0 %v912
    %1137 = vmatpush1.bf16.msra.mxu0 %v911
    %1138 = vmatprep.subr.bf16.mxu0 %v916
    %1139 = vmatpush1.bf16.msra.mxu0 %v915
    %1140 = vmatprep.subr.bf16.mxu0 %v920
    %1141 = vmatpush1.bf16.msra.mxu0 %v919
    %1142 = vmatprep.subr.bf16.mxu0 %v924
    %1143 = vmatpush1.bf16.msra.mxu0 %v923
    %1144 = vmatprep.subr.bf16.mxu0 %v928
    %1145 = vmatpush1.bf16.msra.mxu0 %v927
    %1146 = vmatprep.subr.bf16.mxu0 %v932
    %1147 = vmatpush1.bf16.msra.mxu0 %v931
    %1148 = vmatprep.subr.bf16.mxu0 %v936
    %1149 = vmatpush1.bf16.msra.mxu0 %v935
    %1150 = vmatprep.subr.bf16.mxu0 %v940
    %1151 = vmatpush1.bf16.msra.mxu0 %v939
    %1152 = vmatprep.subr.bf16.mxu0 %v944
    %1153 = vmatpush1.bf16.msra.mxu0 %v943
    %1154 = vmatprep.subr.bf16.mxu0 %v948
    %1155 = vmatpush1.bf16.msra.mxu0 %v947
    %1156 = vmatprep.subr.bf16.mxu0 %v952
    %1157 = vmatpush1.bf16.msra.mxu0 %v951
    %1158 = vmatprep.subr.bf16.mxu0 %v956
    %1159 = vmatpush1.bf16.msra.mxu0 %v955
    %1160 = vmatprep.mubr.bf16.mxu0 %v296
    %1161 = vmatmul.mubr.bf16.gmra.mrb[0].mxu0 %v295
    %v1162 = vpop.f32.mrb[0].mxu0
    %v1163 = vadd.f32 %v1122, %v1162
    %v1164 = vpop.f32.mrb[0].mxu0
    %v1165 = vadd.f32 %v1124, %v1164
    %v1166 = vpop.f32.mrb[0].mxu0
    %v1167 = vpop.f32.mrb[0].mxu0
    %1168 = vdwg.mxu0
    %1169 = vmatprep.subr.bf16.mxu0 %v834
    %1170 = vmatpush1.bf16.msra.mxu0 %v833
    %1171 = vmatprep.subr.bf16.mxu0 %v838
    %1172 = vmatpush1.bf16.msra.mxu0 %v837
    %1173 = vmatprep.subr.bf16.mxu0 %v842
    %1174 = vmatpush1.bf16.msra.mxu0 %v841
    %1175 = vmatprep.subr.bf16.mxu0 %v846
    %1176 = vmatpush1.bf16.msra.mxu0 %v845
    %1177 = vmatprep.subr.bf16.mxu0 %v850
    %1178 = vmatpush1.bf16.msra.mxu0 %v849
    %1179 = vmatprep.subr.bf16.mxu0 %v854
    %1180 = vmatpush1.bf16.msra.mxu0 %v853
    %1181 = vmatprep.subr.bf16.mxu0 %v858
    %1182 = vmatpush1.bf16.msra.mxu0 %v857
    %1183 = vmatprep.subr.bf16.mxu0 %v862
    %1184 = vmatpush1.bf16.msra.mxu0 %v861
    %1185 = vmatprep.subr.bf16.mxu0 %v866
    %1186 = vmatpush1.bf16.msra.mxu0 %v865
    %1187 = vmatprep.subr.bf16.mxu0 %v870
    %1188 = vmatpush1.bf16.msra.mxu0 %v869
    %1189 = vmatprep.subr.bf16.mxu0 %v874
    %1190 = vmatpush1.bf16.msra.mxu0 %v873
    %1191 = vmatprep.subr.bf16.mxu0 %v878
    %1192 = vmatpush1.bf16.msra.mxu0 %v877
    %1193 = vmatprep.subr.bf16.mxu0 %v882
    %1194 = vmatpush1.bf16.msra.mxu0 %v881
    %1195 = vmatprep.subr.bf16.mxu0 %v886
    %1196 = vmatpush1.bf16.msra.mxu0 %v885
    %1197 = vmatprep.subr.bf16.mxu0 %v890
    %1198 = vmatpush1.bf16.msra.mxu0 %v889
    %1199 = vmatprep.subr.bf16.mxu0 %v894
    %1200 = vmatpush1.bf16.msra.mxu0 %v893
    %1201 = vmatprep.mubr.bf16.mxu0 %v294
    %1202 = vmatmul.mubr.bf16.gmra.mrb[0].mxu0 %v293
    %v1203 = vpop.f32.mrb[0].mxu0
    %v1204 = vadd.f32 %v438, %v1203
    %v1205 = vpop.f32.mrb[0].mxu0
    %v1206 = vadd.f32 %v442, %v1205
    %v1207 = vpop.f32.mrb[0].mxu0
    %v1208 = vpop.f32.mrb[0].mxu0
    %1209 = vdwg.mxu0
    %1210 = vmatprep.subr.bf16.mxu0 %v898
    %1211 = vmatpush1.bf16.msra.mxu0 %v897
    %1212 = vmatprep.subr.bf16.mxu0 %v902
    %1213 = vmatpush1.bf16.msra.mxu0 %v901
    %1214 = vmatprep.subr.bf16.mxu0 %v906
    %1215 = vmatpush1.bf16.msra.mxu0 %v905
    %1216 = vmatprep.subr.bf16.mxu0 %v910
    %1217 = vmatpush1.bf16.msra.mxu0 %v909
    %1218 = vmatprep.subr.bf16.mxu0 %v914
    %1219 = vmatpush1.bf16.msra.mxu0 %v913
    %1220 = vmatprep.subr.bf16.mxu0 %v918
    %1221 = vmatpush1.bf16.msra.mxu0 %v917
    %1222 = vmatprep.subr.bf16.mxu0 %v922
    %1223 = vmatpush1.bf16.msra.mxu0 %v921
    %1224 = vmatprep.subr.bf16.mxu0 %v926
    %1225 = vmatpush1.bf16.msra.mxu0 %v925
    %1226 = vmatprep.subr.bf16.mxu0 %v930
    %1227 = vmatpush1.bf16.msra.mxu0 %v929
    %1228 = vmatprep.subr.bf16.mxu0 %v934
    %1229 = vmatpush1.bf16.msra.mxu0 %v933
    %1230 = vmatprep.subr.bf16.mxu0 %v938
    %1231 = vmatpush1.bf16.msra.mxu0 %v937
    %1232 = vmatprep.subr.bf16.mxu0 %v942
    %1233 = vmatpush1.bf16.msra.mxu0 %v941
    %1234 = vmatprep.subr.bf16.mxu0 %v946
    %1235 = vmatpush1.bf16.msra.mxu0 %v945
    %1236 = vmatprep.subr.bf16.mxu0 %v950
    %1237 = vmatpush1.bf16.msra.mxu0 %v949
    %1238 = vmatprep.subr.bf16.mxu0 %v954
    %1239 = vmatpush1.bf16.msra.mxu0 %v953
    %1240 = vmatprep.subr.bf16.mxu0 %v958
    %1241 = vmatpush1.bf16.msra.mxu0 %v957
    %1242 = vmatprep.mubr.bf16.mxu0 %v296
    %1243 = vmatmul.mubr.bf16.gmra.mrb[0].mxu0 %v295
    %v1244 = vpop.f32.mrb[0].mxu0
    %v1245 = vadd.f32 %v1204, %v1244
    %v1246 = vpop.f32.mrb[0].mxu0
    %v1247 = vadd.f32 %v1206, %v1246
    %v1248 = vpop.f32.mrb[0].mxu0
    %v1249 = vpop.f32.mrb[0].mxu0
    %1250 = vdwg.mxu0
    %v1251 = vmax.f32 %v1163, 0.0
    %v1252 = vmax.f32 %v1165, 0.0
    %v1253 = vmax.f32 %v1245, 0.0
    %v1254 = vmax.f32 %v1247, 0.0
    %v1255 = vpack.c.bf16 %v1251, %v1251
    %v1256 = vpack.c.bf16 %v1252, %v1252
    %v1257 = vpack.c.bf16 %v1253, %v1253
    %v1258 = vpack.c.bf16 %v1254, %v1254
    %v1259 = vld [vmem:[#allocation8] sm:$0xf]
    %v1260 = vld [vmem:[#allocation8 + $0x4] sm:$0xf]
    %v1261 = vld [vmem:[#allocation8 + $0x8] sm:$0xf]
    %v1262 = vld [vmem:[#allocation8 + $0xc] sm:$0xf]
    %v1263 = vld [vmem:[#allocation8 + $0x10] sm:$0xf]
    %v1264 = vld [vmem:[#allocation8 + $0x14] sm:$0xf]
    %v1265 = vld [vmem:[#allocation8 + $0x18] sm:$0xf]
    %v1266 = vld [vmem:[#allocation8 + $0x1c] sm:$0xf]
    %v1267 = vld [vmem:[#allocation8 + $0x20] sm:$0xf]
    %v1268 = vld [vmem:[#allocation8 + $0x24] sm:$0xf]
    %v1269 = vld [vmem:[#allocation8 + $0x28] sm:$0xf]
    %v1270 = vld [vmem:[#allocation8 + $0x2c] sm:$0xf]
    %v1271 = vld [vmem:[#allocation8 + $0x30] sm:$0xf]
    %v1272 = vld [vmem:[#allocation8 + $0x34] sm:$0xf]
    %v1273 = vld [vmem:[#allocation8 + $0x38] sm:$0xf]
    %v1274 = vld [vmem:[#allocation8 + $0x3c] sm:$0xf]
    %v1275 = vld [vmem:[#allocation8 + $0x40] sm:$0xf]
    %v1276 = vld [vmem:[#allocation8 + $0x44] sm:$0xf]
    %v1277 = vld [vmem:[#allocation8 + $0x48] sm:$0xf]
    %v1278 = vld [vmem:[#allocation8 + $0x4c] sm:$0xf]
    %v1279 = vld [vmem:[#allocation8 + $0x50] sm:$0xf]
    %v1280 = vld [vmem:[#allocation8 + $0x54] sm:$0xf]
    %v1281 = vld [vmem:[#allocation8 + $0x58] sm:$0xf]
    %v1282 = vld [vmem:[#allocation8 + $0x5c] sm:$0xf]
    %v1283 = vld [vmem:[#allocation8 + $0x60] sm:$0xf]
    %v1284 = vld [vmem:[#allocation8 + $0x64] sm:$0xf]
    %v1285 = vld [vmem:[#allocation8 + $0x68] sm:$0xf]
    %v1286 = vld [vmem:[#allocation8 + $0x6c] sm:$0xf]
    %v1287 = vld [vmem:[#allocation8 + $0x70] sm:$0xf]
    %v1288 = vld [vmem:[#allocation8 + $0x74] sm:$0xf]
    %v1289 = vld [vmem:[#allocation8 + $0x78] sm:$0xf]
    %v1290 = vld [vmem:[#allocation8 + $0x7c] sm:$0xf]
    %v1291 = vld [vmem:[#allocation8 + $0x80] sm:$0xf]
    %v1292 = vld [vmem:[#allocation8 + $0x84] sm:$0xf]
    %v1293 = vld [vmem:[#allocation8 + $0x88] sm:$0xf]
    %v1294 = vld [vmem:[#allocation8 + $0x8c] sm:$0xf]
    %v1295 = vld [vmem:[#allocation8 + $0x90] sm:$0xf]
    %v1296 = vld [vmem:[#allocation8 + $0x94] sm:$0xf]
    %v1297 = vld [vmem:[#allocation8 + $0x98] sm:$0xf]
    %v1298 = vld [vmem:[#allocation8 + $0x9c] sm:$0xf]
    %v1299 = vld [vmem:[#allocation8 + $0xa0] sm:$0xf]
    %v1300 = vld [vmem:[#allocation8 + $0xa4] sm:$0xf]
    %v1301 = vld [vmem:[#allocation8 + $0xa8] sm:$0xf]
    %v1302 = vld [vmem:[#allocation8 + $0xac] sm:$0xf]
    %v1303 = vld [vmem:[#allocation8 + $0xb0] sm:$0xf]
    %v1304 = vld [vmem:[#allocation8 + $0xb4] sm:$0xf]
    %v1305 = vld [vmem:[#allocation8 + $0xb8] sm:$0xf]
    %v1306 = vld [vmem:[#allocation8 + $0xbc] sm:$0xf]
    %v1307 = vld [vmem:[#allocation8 + $0xc0] sm:$0xf]
    %v1308 = vld [vmem:[#allocation8 + $0xc4] sm:$0xf]
    %v1309 = vld [vmem:[#allocation8 + $0xc8] sm:$0xf]
    %v1310 = vld [vmem:[#allocation8 + $0xcc] sm:$0xf]
    %v1311 = vld [vmem:[#allocation8 + $0xd0] sm:$0xf]
    %v1312 = vld [vmem:[#allocation8 + $0xd4] sm:$0xf]
    %v1313 = vld [vmem:[#allocation8 + $0xd8] sm:$0xf]
    %v1314 = vld [vmem:[#allocation8 + $0xdc] sm:$0xf]
    %v1315 = vld [vmem:[#allocation8 + $0xe0] sm:$0xf]
    %v1316 = vld [vmem:[#allocation8 + $0xe4] sm:$0xf]
    %v1317 = vld [vmem:[#allocation8 + $0xe8] sm:$0xf]
    %v1318 = vld [vmem:[#allocation8 + $0xec] sm:$0xf]
    %v1319 = vld [vmem:[#allocation8 + $0xf0] sm:$0xf]
    %v1320 = vld [vmem:[#allocation8 + $0xf4] sm:$0xf]
    %v1321 = vld [vmem:[#allocation8 + $0xf8] sm:$0xf]
    %v1322 = vld [vmem:[#allocation8 + $0xfc] sm:$0xf]
    %v1323 = vld [vmem:[%s6] sm:$0x1]
    %v1325 = vlaneseq
    %v1326 = vshrl.u32 %v1325, 7
    %v1327 = vsub.s32 0, %v1326
    %v1328 = vrot.slane %v1323, %v1327
    %v1394 = vunpack.c.l.b16 %v1259
    %v1395 = vunpack.c.l.b16 %v1260
    %v1396 = vunpack.c.l.b16 %v1261
    %v1397 = vunpack.c.l.b16 %v1262
    %v1398 = vunpack.c.l.b16 %v1263
    %v1399 = vunpack.c.l.b16 %v1264
    %v1400 = vunpack.c.l.b16 %v1265
    %v1401 = vunpack.c.l.b16 %v1266
    %v1402 = vunpack.c.l.b16 %v1267
    %v1403 = vunpack.c.l.b16 %v1268
    %v1404 = vunpack.c.l.b16 %v1269
    %v1405 = vunpack.c.l.b16 %v1270
    %v1406 = vunpack.c.l.b16 %v1271
    %v1407 = vunpack.c.l.b16 %v1272
    %v1408 = vunpack.c.l.b16 %v1273
    %v1409 = vunpack.c.l.b16 %v1274
    %v1410 = vunpack.c.l.b16 %v1275
    %v1411 = vunpack.c.l.b16 %v1276
    %v1412 = vunpack.c.l.b16 %v1277
    %v1413 = vunpack.c.l.b16 %v1278
    %v1414 = vunpack.c.l.b16 %v1279
    %v1415 = vunpack.c.l.b16 %v1280
    %v1416 = vunpack.c.l.b16 %v1281
    %v1417 = vunpack.c.l.b16 %v1282
    %v1418 = vunpack.c.l.b16 %v1283
    %v1419 = vunpack.c.l.b16 %v1284
    %v1420 = vunpack.c.l.b16 %v1285
    %v1421 = vunpack.c.l.b16 %v1286
    %v1422 = vunpack.c.l.b16 %v1287
    %v1423 = vunpack.c.l.b16 %v1288
    %v1424 = vunpack.c.l.b16 %v1289
    %v1425 = vunpack.c.l.b16 %v1290
    %v1426 = vunpack.c.l.b16 %v1291
    %v1427 = vunpack.c.l.b16 %v1292
    %v1428 = vunpack.c.l.b16 %v1293
    %v1429 = vunpack.c.l.b16 %v1294
    %v1430 = vunpack.c.l.b16 %v1295
    %v1431 = vunpack.c.l.b16 %v1296
    %v1432 = vunpack.c.l.b16 %v1297
    %v1433 = vunpack.c.l.b16 %v1298
    %v1434 = vunpack.c.l.b16 %v1299
    %v1435 = vunpack.c.l.b16 %v1300
    %v1436 = vunpack.c.l.b16 %v1301
    %v1437 = vunpack.c.l.b16 %v1302
    %v1438 = vunpack.c.l.b16 %v1303
    %v1439 = vunpack.c.l.b16 %v1304
    %v1440 = vunpack.c.l.b16 %v1305
    %v1441 = vunpack.c.l.b16 %v1306
    %v1442 = vunpack.c.l.b16 %v1307
    %v1443 = vunpack.c.l.b16 %v1308
    %v1444 = vunpack.c.l.b16 %v1309
    %v1445 = vunpack.c.l.b16 %v1310
    %v1446 = vunpack.c.l.b16 %v1311
    %v1447 = vunpack.c.l.b16 %v1312
    %v1448 = vunpack.c.l.b16 %v1313
    %v1449 = vunpack.c.l.b16 %v1314
    %v1450 = vunpack.c.l.b16 %v1315
    %v1451 = vunpack.c.l.b16 %v1316
    %v1452 = vunpack.c.l.b16 %v1317
    %v1453 = vunpack.c.l.b16 %v1318
    %v1454 = vunpack.c.l.b16 %v1319
    %v1455 = vunpack.c.l.b16 %v1320
    %v1456 = vunpack.c.l.b16 %v1321
    %v1457 = vunpack.c.l.b16 %v1322
    %v1458 = vpack.c.b16 %v1395, %v1394
    %v1459 = vpack.c.b16 %v1397, %v1396
    %v1460 = vpack.c.b16 %v1399, %v1398
    %v1461 = vpack.c.b16 %v1401, %v1400
    %v1462 = vpack.c.b16 %v1403, %v1402
    %v1463 = vpack.c.b16 %v1405, %v1404
    %v1464 = vpack.c.b16 %v1407, %v1406
    %v1465 = vpack.c.b16 %v1409, %v1408
    %v1466 = vpack.c.b16 %v1411, %v1410
    %v1467 = vpack.c.b16 %v1413, %v1412
    %v1468 = vpack.c.b16 %v1415, %v1414
    %v1469 = vpack.c.b16 %v1417, %v1416
    %v1470 = vpack.c.b16 %v1419, %v1418
    %v1471 = vpack.c.b16 %v1421, %v1420
    %v1472 = vpack.c.b16 %v1423, %v1422
    %v1473 = vpack.c.b16 %v1425, %v1424
    %v1474 = vpack.c.b16 %v1427, %v1426
    %v1475 = vpack.c.b16 %v1429, %v1428
    %v1476 = vpack.c.b16 %v1431, %v1430
    %v1477 = vpack.c.b16 %v1433, %v1432
    %v1478 = vpack.c.b16 %v1435, %v1434
    %v1479 = vpack.c.b16 %v1437, %v1436
    %v1480 = vpack.c.b16 %v1439, %v1438
    %v1481 = vpack.c.b16 %v1441, %v1440
    %v1482 = vpack.c.b16 %v1443, %v1442
    %v1483 = vpack.c.b16 %v1445, %v1444
    %v1484 = vpack.c.b16 %v1447, %v1446
    %v1485 = vpack.c.b16 %v1449, %v1448
    %v1486 = vpack.c.b16 %v1451, %v1450
    %v1487 = vpack.c.b16 %v1453, %v1452
    %v1488 = vpack.c.b16 %v1455, %v1454
    %v1489 = vpack.c.b16 %v1457, %v1456
    %1522 = vmatprep.subr.bf16.mxu0 0
    %1523 = vmatpush1.bf16.msra.mxu0 %v1458
    %1524 = vmatprep.subr.bf16.mxu0 0
    %1525 = vmatpush1.bf16.msra.mxu0 %v1459
    %1526 = vmatprep.subr.bf16.mxu0 0
    %1527 = vmatpush1.bf16.msra.mxu0 %v1460
    %1528 = vmatprep.subr.bf16.mxu0 0
    %1529 = vmatpush1.bf16.msra.mxu0 %v1461
    %1530 = vmatprep.subr.bf16.mxu0 0
    %1531 = vmatpush1.bf16.msra.mxu0 %v1462
    %1532 = vmatprep.subr.bf16.mxu0 0
    %1533 = vmatpush1.bf16.msra.mxu0 %v1463
    %1534 = vmatprep.subr.bf16.mxu0 0
    %1535 = vmatpush1.bf16.msra.mxu0 %v1464
    %1536 = vmatprep.subr.bf16.mxu0 0
    %1537 = vmatpush1.bf16.msra.mxu0 %v1465
    %1538 = vmatprep.subr.bf16.mxu0 0
    %1539 = vmatpush1.bf16.msra.mxu0 %v1466
    %1540 = vmatprep.subr.bf16.mxu0 0
    %1541 = vmatpush1.bf16.msra.mxu0 %v1467
    %1542 = vmatprep.subr.bf16.mxu0 0
    %1543 = vmatpush1.bf16.msra.mxu0 %v1468
    %1544 = vmatprep.subr.bf16.mxu0 0
    %1545 = vmatpush1.bf16.msra.mxu0 %v1469
    %1546 = vmatprep.subr.bf16.mxu0 0
    %1547 = vmatpush1.bf16.msra.mxu0 %v1470
    %1548 = vmatprep.subr.bf16.mxu0 0
    %1549 = vmatpush1.bf16.msra.mxu0 %v1471
    %1550 = vmatprep.subr.bf16.mxu0 0
    %1551 = vmatpush1.bf16.msra.mxu0 %v1472
    %1552 = vmatprep.subr.bf16.mxu0 0
    %1553 = vmatpush1.bf16.msra.mxu0 %v1473
    %1554 = vmatprep.mubr.bf16.mxu0 %v1256
    %1555 = vmatmul.mubr.bf16.gmra.mrb[0].mxu0 %v1255
    %v1556 = vpop.f32.mrb[0].mxu0
    %v1557 = vadd.f32 %v1328, %v1556
    %v1558 = vpop.f32.mrb[0].mxu0
    %v1559 = vpop.f32.mrb[0].mxu0
    %v1560 = vpop.f32.mrb[0].mxu0
    %1561 = vdwg.mxu0
    %1562 = vmatprep.subr.bf16.mxu0 0
    %1563 = vmatpush1.bf16.msra.mxu0 %v1474
    %1564 = vmatprep.subr.bf16.mxu0 0
    %1565 = vmatpush1.bf16.msra.mxu0 %v1475
    %1566 = vmatprep.subr.bf16.mxu0 0
    %1567 = vmatpush1.bf16.msra.mxu0 %v1476
    %1568 = vmatprep.subr.bf16.mxu0 0
    %1569 = vmatpush1.bf16.msra.mxu0 %v1477
    %1570 = vmatprep.subr.bf16.mxu0 0
    %1571 = vmatpush1.bf16.msra.mxu0 %v1478
    %1572 = vmatprep.subr.bf16.mxu0 0
    %1573 = vmatpush1.bf16.msra.mxu0 %v1479
    %1574 = vmatprep.subr.bf16.mxu0 0
    %1575 = vmatpush1.bf16.msra.mxu0 %v1480
    %1576 = vmatprep.subr.bf16.mxu0 0
    %1577 = vmatpush1.bf16.msra.mxu0 %v1481
    %1578 = vmatprep.subr.bf16.mxu0 0
    %1579 = vmatpush1.bf16.msra.mxu0 %v1482
    %1580 = vmatprep.subr.bf16.mxu0 0
    %1581 = vmatpush1.bf16.msra.mxu0 %v1483
    %1582 = vmatprep.subr.bf16.mxu0 0
    %1583 = vmatpush1.bf16.msra.mxu0 %v1484
    %1584 = vmatprep.subr.bf16.mxu0 0
    %1585 = vmatpush1.bf16.msra.mxu0 %v1485
    %1586 = vmatprep.subr.bf16.mxu0 0
    %1587 = vmatpush1.bf16.msra.mxu0 %v1486
    %1588 = vmatprep.subr.bf16.mxu0 0
    %1589 = vmatpush1.bf16.msra.mxu0 %v1487
    %1590 = vmatprep.subr.bf16.mxu0 0
    %1591 = vmatpush1.bf16.msra.mxu0 %v1488
    %1592 = vmatprep.subr.bf16.mxu0 0
    %1593 = vmatpush1.bf16.msra.mxu0 %v1489
    %1594 = vmatprep.mubr.bf16.mxu0 %v1258
    %1595 = vmatmul.mubr.bf16.gmra.mrb[0].mxu0 %v1257
    %v1596 = vpop.f32.mrb[0].mxu0
    %v1597 = vadd.f32 %v1557, %v1596
    %v1598 = vpop.f32.mrb[0].mxu0
    %v1599 = vpop.f32.mrb[0].mxu0
    %v1600 = vpop.f32.mrb[0].mxu0
    %1601 = vdwg.mxu0
    %v1602 = vpack.c.bf16 %v1597, %v1597
    %v1605 = vunpack.c.l.s4 1966171168
    %v1606 = vunpack.c.0.s8 %v1605
    %v1607 = vlaneseq
    %v1608 = vshrl.u32 %v1607, 7
    %v1609 = vsub.s32 %v1606, %v1608
    %v1610 = vrot.slane %v1602, %v1609
    %v1611 = vcombine.high %v1610, %v1610
    %v1613 = vunpack.c.l.s4 1966171168
    %v1614 = vunpack.c.0.s8 %v1613
    %v1615 = vlaneseq
    %v1616 = vshrl.u32 %v1615, 7
    %v1617 = vsub.s32 %v1614, %v1616
    %v1618 = vrot.slane %v1610, %v1617
    %v1620 = vunpack.c.l.s4 1966171168
    %v1621 = vunpack.c.0.s8 %v1620
    %v1622 = vlaneseq
    %v1623 = vshrl.u32 %v1622, 7
    %v1624 = vsub.s32 %v1621, %v1623
    %v1625 = vrot.slane %v1611, %v1624
    %v1626 = vcombine.high %v1618, %v1618
    %v1627 = vcombine.high %v1625, %v1625
    %1632 = vst [vmem:[#allocation10] sm:$0x1] %v1618
    %1633 = vst [vmem:[#allocation10 + $0x1] sm:$0x1] %v1625
    %1634 = vst [vmem:[#allocation10 + $0x2] sm:$0x1] %v1626
    %1635 = vst [vmem:[#allocation10 + $0x3] sm:$0x1] %v1627
    // Predicated region
    $region46: #{tpu_custom_call.1} parent=1 // pred_check
      _
    $region47: #{tpu_custom_call.1} parent=1 // pred_check_branch
      %1637 = sbr.rel (0) target = $region49
    $region48: #{tpu_custom_call.1} parent=1 // pred_region
      %s1639 = ssub.s32 64, 16
      %1640 = vsyncadd [#allocation4], %s1639
      %s1641 = sshll.u32 [#allocation10], 4
      %s1642 = int_to_ptr.vmem [resolvable:$true] %s1641
      %1647 = dma.vmem_to_hbm [thread:$0]  %s1642, 16, %s7, [#allocation4], 16, 16, 1
    $region49: #{tpu_custom_call.1} parent=1 // pred_fallthru
      _
    // Predicated region
    $region50: #{tpu_custom_call.1} parent=1 // pred_check
      _
    $region51: #{tpu_custom_call.1} parent=1 // pred_check_branch
      %1649 = sbr.rel (0) target = $region53
    $region52: #{tpu_custom_call.1} parent=1 // pred_region
      %1650 = dma.done [#allocation4], 64
    $region53: #{tpu_custom_call.1} parent=1 // pred_fallthru
      _
    %1651 = vsyncpa [#allocation3], 1
    %1652 = vsyncpa [#allocation6], 1
    %1653 = vsyncpa [#allocation9], 1
    %1654 = vsyncpa [#allocation4], 1

</llo_original>
